<compile_context>
chip_gen: v5e
topology: v5e:2x2
jax: 0.10.0
libtpu: 0.0.40
codegen_flags: <defaults>
</compile_context>

<pallas_src>
import functools

import jax
import jax.numpy as jnp
import numpy as np
from jax.experimental import pallas as pl
from jax.experimental.pallas import tpu as pltpu

LANE = 128      # lane width: feature axis is padded to a multiple of this
SUBLANE = 8     # sublane width: batch tiles are multiples of this


def _cdiv(a, b):
    return -(-a // b)


def _round_up(n, m):
    return ((n + m - 1) // m) * m


def _pad_to(a, shape):
    widths = [(0, s - d) for d, s in zip(a.shape, shape)]
    if all(w == (0, 0) for w in widths):
        return a
    return jnp.pad(a, widths)


def _choose_batch_tiling(batch, block_b):
    """Near-even batch tiles: multiples of 8, <= block_b, >=2 tiles if possible.

    Keeps ragged-batch padding below one sublane tile per grid step (instead
    of up to block_b-1 dead rows) and gives both v7x TensorCores work under
    dimension_semantics=("parallel",).
    """
    b8 = _round_up(batch, SUBLANE)
    n_tiles = max(1, _cdiv(b8, block_b))
    if n_tiles == 1 and b8 >= 2 * SUBLANE:
        n_tiles = 2                         # feed both TCs on v7x megacore
    tile_b = _round_up(_cdiv(b8, n_tiles), SUBLANE)
    return tile_b, n_tiles * tile_b, n_tiles


def _vmem_limit_bytes():
    # v5e/v6e: 128 MiB physical VMEM, v7x: 64 MiB.  Budget ~3/4 of physical
    # (capped at 100 MiB) instead of the 16/32 MiB scoped default.
    try:
        cap = pltpu.get_tpu_info().vmem_capacity_bytes
    except Exception:
        cap = 64 * 1024 * 1024
    return int(min(100 * 1024 * 1024, (cap * 3) // 4))


def residual_block_kernel(x_ref, ctx_ref, w1_ref, b1_ref, w2_ref, b2_ref,
                          wc_ref, bc_ref, o_ref):
    x = x_ref[...]                                            # (tB, Fp) f32
    # Independent gate matmul first: MXU work that hides the bias-add / relu
    # latency between the two dependent matmuls below.
    g = jnp.dot(ctx_ref[...].astype(jnp.bfloat16), wc_ref[...],
                preferred_element_type=jnp.float32) + bc_ref[...]
    # Residual branch: relu -> linear1 -> relu -> dropout(p=0, identity)
    # -> linear2.  bf16 MXU operands, f32 accumulation.
    t = jnp.maximum(x, 0.0).astype(jnp.bfloat16)
    t = jnp.dot(t, w1_ref[...], preferred_element_type=jnp.float32) + b1_ref[...]
    t = jnp.maximum(t, 0.0).astype(jnp.bfloat16)
    t = jnp.dot(t, w2_ref[...], preferred_element_type=jnp.float32) + b2_ref[...]
    # GLU(cat([t, g], dim=1), dim=1) == t * sigmoid(g); residual add in f32.
    o_ref[...] = (x + t * jax.nn.sigmoid(g)).astype(o_ref.dtype)


@functools.partial(jax.jit,
                   static_argnames=("block_b", "weight_buffers", "out_dtype"))
def residual_block(x, context, w1, b1, w2, b2, wc, bc, *,
                   block_b=512, weight_buffers=1, out_dtype=None):
    """x: (B, F); context: (B, C). Weights in PyTorch (out, in) convention.

    weight_buffers=1 single-buffers the VMEM-resident weights (they are only
    DMA'd once).  out_dtype=jnp.bfloat16 halves output HBM traffic if the
    consumer tolerates a bf16 result (default keeps x.dtype).
    """
    B, F = x.shape
    C = context.shape[1]
    out_dtype = x.dtype if out_dtype is None else out_dtype

    Fp = _round_up(F, LANE)                       # lane-dense feature axis
    tile_b, Bp, n_tiles = _choose_batch_tiling(B, block_b)

    # Zero padding preserves semantics: padded feature columns of x / W* / b*
    # are 0, so padded columns of t stay 0 through both matmuls; the gate
    # there is sigmoid(0)=0.5 but multiplies t==0; the residual adds x==0.
    # All pads below are no-ops when B % tile_b == 0 and F % 128 == 0; the
    # context keeps its logical width (full-dim block) and is cast in-kernel.
    x_p = _pad_to(x, (Bp, Fp))
    ctx_p = _pad_to(context, (Bp, C))
    # NOTE: in a real model, transpose + bf16-cast the weights once outside
    # the hot loop rather than per call.
    w1_p = _pad_to(w1.T.astype(jnp.bfloat16), (Fp, Fp))      # (in, out)
    w2_p = _pad_to(w2.T.astype(jnp.bfloat16), (Fp, Fp))
    wc_p = _pad_to(wc.T.astype(jnp.bfloat16), (C, Fp))
    b1_p = _pad_to(b1.astype(jnp.float32).reshape(1, F), (1, Fp))
    b2_p = _pad_to(b2.astype(jnp.float32).reshape(1, F), (1, Fp))
    bc_p = _pad_to(bc.astype(jnp.float32).reshape(1, F), (1, Fp))

    def batch_spec(shape):                          # streams over the grid
        return pl.BlockSpec(shape, lambda i: (i, 0))

    def resident_spec(shape):
        # Constant index_map: block is DMA'd once and stays resident in VMEM.
        # Single-buffered (weight_buffers=1) so it doesn't take 2x VMEM.
        if weight_buffers == 2:
            return pl.BlockSpec(shape, lambda i: (0, 0))
        return pl.BlockSpec(shape, lambda i: (0, 0),
                            pipeline_mode=pl.Buffered(weight_buffers))

    out = pl.pallas_call(
        residual_block_kernel,
        out_shape=jax.ShapeDtypeStruct((Bp, Fp), out_dtype),
        grid_spec=pltpu.PrefetchScalarGridSpec(
            num_scalar_prefetch=0,
            grid=(n_tiles,),
            in_specs=[
                batch_spec((tile_b, Fp)),     # x tile
                batch_spec((tile_b, C)),      # context tile (f32 in HBM)
                resident_spec((Fp, Fp)),      # W1 (resident in VMEM)
                resident_spec((1, Fp)),       # b1
                resident_spec((Fp, Fp)),      # W2
                resident_spec((1, Fp)),       # b2
                resident_spec((C, Fp)),       # Wc
                resident_spec((1, Fp)),       # bc
            ],
            out_specs=batch_spec((tile_b, Fp)),
        ),
        compiler_params=pltpu.CompilerParams(
            dimension_semantics=("parallel",),      # megacore-shard batch
            vmem_limit_bytes=_vmem_limit_bytes(),
        ),
    )(x_p, ctx_p, w1_p, b1_p, w2_p, b2_p, wc_p, bc_p)

    return out[:B, :F]


def _reference(x, context, w1, b1, w2, b2, wc, bc):
    t = jax.nn.relu(x)
    t = t @ w1.T + b1
    t = jax.nn.relu(t)
    t = t @ w2.T + b2
    g = context @ wc.T + bc
    return x + t * jax.nn.sigmoid(g)


if __name__ == "__main__":
    B, F, C = 8, 32, 16            # batch, features, context_features

    key = jax.random.PRNGKey(0)
    keys = jax.random.split(key, 8)

    # Deterministic parameter init (mirrors nn.Linear default uniform +
    # zero_initialization on linear_layers[-1]).
    lim1 = 1.0 / np.sqrt(F)
    limc = 1.0 / np.sqrt(C)
    w1 = jax.random.uniform(keys[0], (F, F), jnp.float32, -lim1, lim1)
    b1 = jax.random.uniform(keys[1], (F,), jnp.float32, -lim1, lim1)
    w2 = jax.random.uniform(keys[2], (F, F), jnp.float32, -0.001, 0.001)  # zero_init
    b2 = jax.random.uniform(keys[3], (F,), jnp.float32, -0.001, 0.001)
    wc = jax.random.uniform(keys[4], (F, C), jnp.float32, -limc, limc)
    bc = jax.random.uniform(keys[5], (F,), jnp.float32, -limc, limc)

    x = jax.random.normal(keys[6], (B, F), jnp.float32)
    ctx = jax.random.normal(keys[7], (B, C), jnp.float32)

    def run(buffers):
        return jax.block_until_ready(
            residual_block(x, ctx, w1, b1, w2, b2, wc, bc,
                           weight_buffers=buffers))

    try:
        out = run(1)      # preferred: single-buffered resident weights
    except Exception:
        out = run(2)      # safety net: default double-buffering

    ref = _reference(x, ctx, w1, b1, w2, b2, wc, bc)
    # bf16 matmul operands with f32 accumulation -> relaxed tolerance vs f32 ref.
    np.testing.assert_allclose(np.asarray(out), np.asarray(ref),
                               rtol=1e-2, atol=1e-2)

    print("KERNEL_OK")
</pallas_src>

<mosaic_0001>
module attributes {stable_mosaic.version = 11 : i64} {
  func.func @residual_block_kernel(%arg0: i32, %arg1: memref<8x128xf32, #tpu.memory_space<vmem>>, %arg2: memref<8x16xf32, #tpu.memory_space<vmem>>, %arg3: memref<128x128xbf16, #tpu.memory_space<vmem>>, %arg4: memref<1x128xf32, #tpu.memory_space<vmem>>, %arg5: memref<128x128xbf16, #tpu.memory_space<vmem>>, %arg6: memref<1x128xf32, #tpu.memory_space<vmem>>, %arg7: memref<16x128xbf16, #tpu.memory_space<vmem>>, %arg8: memref<1x128xf32, #tpu.memory_space<vmem>>, %arg9: memref<8x128xf32, #tpu.memory_space<vmem>>) attributes {dimension_semantics = [#tpu.dimension_semantics<parallel>], iteration_bounds = array<i64: 1>, scalar_prefetch = 0 : i64, scratch_operands = 0 : i64, tpu.core_type = #tpu.core_type<tc>, window_params = [{transform_indices = @transform_0, window_bounds = array<i64: 8, 128>}, {transform_indices = @transform_1, window_bounds = array<i64: 8, 16>}, {pipeline_mode = #tpu.pipeline_mode<synchronous>, transform_indices = @transform_2, window_bounds = array<i64: 128, 128>}, {pipeline_mode = #tpu.pipeline_mode<synchronous>, transform_indices = @transform_3, window_bounds = array<i64: 1, 128>}, {pipeline_mode = #tpu.pipeline_mode<synchronous>, transform_indices = @transform_4, window_bounds = array<i64: 128, 128>}, {pipeline_mode = #tpu.pipeline_mode<synchronous>, transform_indices = @transform_5, window_bounds = array<i64: 1, 128>}, {pipeline_mode = #tpu.pipeline_mode<synchronous>, transform_indices = @transform_6, window_bounds = array<i64: 16, 128>}, {pipeline_mode = #tpu.pipeline_mode<synchronous>, transform_indices = @transform_7, window_bounds = array<i64: 1, 128>}, {transform_indices = @transform_8, window_bounds = array<i64: 8, 128>}]} {
    %c0 = arith.constant 0 : index
    %c0_0 = arith.constant 0 : index
    %0 = vector.load %arg1[%c0, %c0_0] : memref<8x128xf32, #tpu.memory_space<vmem>>, vector<8x128xf32>
    %c0_1 = arith.constant 0 : index
    %c0_2 = arith.constant 0 : index
    %1 = vector.load %arg2[%c0_1, %c0_2] : memref<8x16xf32, #tpu.memory_space<vmem>>, vector<8x16xf32>
    %2 = arith.truncf %1 : vector<8x16xf32> to vector<8x16xbf16>
    %c0_3 = arith.constant 0 : index
    %c0_4 = arith.constant 0 : index
    %3 = vector.load %arg7[%c0_3, %c0_4] : memref<16x128xbf16, #tpu.memory_space<vmem>>, vector<16x128xbf16>
    %cst = arith.constant dense<0.000000e+00> : vector<8x128xf32>
    %4 = tpu.matmul %2, %3, %cst {dimension_numbers = #tpu.dot_dimension_numbers<[1], [0], [0], [1], [0, 0, 1, 1], [], []>} : vector<8x16xbf16>, vector<16x128xbf16>, vector<8x128xf32> -> vector<8x128xf32>
    %c0_5 = arith.constant 0 : index
    %c0_6 = arith.constant 0 : index
    %5 = vector.load %arg8[%c0_5, %c0_6] : memref<1x128xf32, #tpu.memory_space<vmem>>, vector<1x128xf32>
    %6 = vector.broadcast %5 : vector<1x128xf32> to vector<8x128xf32>
    %7 = arith.addf %4, %6 : vector<8x128xf32>
    %cst_7 = arith.constant 0.000000e+00 : f32
    %8 = vector.broadcast %cst_7 : f32 to vector<8x128xf32>
    %9 = arith.maximumf %0, %8 : vector<8x128xf32>
    %10 = arith.truncf %9 : vector<8x128xf32> to vector<8x128xbf16>
    %c0_8 = arith.constant 0 : index
    %c0_9 = arith.constant 0 : index
    %11 = vector.load %arg3[%c0_8, %c0_9] : memref<128x128xbf16, #tpu.memory_space<vmem>>, vector<128x128xbf16>
    %cst_10 = arith.constant dense<0.000000e+00> : vector<8x128xf32>
    %12 = tpu.matmul %10, %11, %cst_10 {dimension_numbers = #tpu.dot_dimension_numbers<[1], [0], [0], [1], [0, 0, 1, 1], [], []>} : vector<8x128xbf16>, vector<128x128xbf16>, vector<8x128xf32> -> vector<8x128xf32>
    %c0_11 = arith.constant 0 : index
    %c0_12 = arith.constant 0 : index
    %13 = vector.load %arg4[%c0_11, %c0_12] : memref<1x128xf32, #tpu.memory_space<vmem>>, vector<1x128xf32>
    %14 = vector.broadcast %13 : vector<1x128xf32> to vector<8x128xf32>
    %15 = arith.addf %12, %14 : vector<8x128xf32>
    %cst_13 = arith.constant 0.000000e+00 : f32
    %16 = vector.broadcast %cst_13 : f32 to vector<8x128xf32>
    %17 = arith.maximumf %15, %16 : vector<8x128xf32>
    %18 = arith.truncf %17 : vector<8x128xf32> to vector<8x128xbf16>
    %c0_14 = arith.constant 0 : index
    %c0_15 = arith.constant 0 : index
    %19 = vector.load %arg5[%c0_14, %c0_15] : memref<128x128xbf16, #tpu.memory_space<vmem>>, vector<128x128xbf16>
    %cst_16 = arith.constant dense<0.000000e+00> : vector<8x128xf32>
    %20 = tpu.matmul %18, %19, %cst_16 {dimension_numbers = #tpu.dot_dimension_numbers<[1], [0], [0], [1], [0, 0, 1, 1], [], []>} : vector<8x128xbf16>, vector<128x128xbf16>, vector<8x128xf32> -> vector<8x128xf32>
    %c0_17 = arith.constant 0 : index
    %c0_18 = arith.constant 0 : index
    %21 = vector.load %arg6[%c0_17, %c0_18] : memref<1x128xf32, #tpu.memory_space<vmem>>, vector<1x128xf32>
    %22 = vector.broadcast %21 : vector<1x128xf32> to vector<8x128xf32>
    %23 = arith.addf %20, %22 : vector<8x128xf32>
    %24 = arith.negf %7 : vector<8x128xf32>
    %25 = math.exp %24 : vector<8x128xf32>
    %cst_19 = arith.constant 1.000000e+00 : f32
    %26 = vector.broadcast %cst_19 : f32 to vector<8x128xf32>
    %27 = arith.addf %26, %25 : vector<8x128xf32>
    %28 = arith.divf %26, %27 : vector<8x128xf32>
    %29 = arith.mulf %23, %28 : vector<8x128xf32>
    %30 = arith.addf %0, %29 : vector<8x128xf32>
    %c0_20 = arith.constant 0 : index
    %c0_21 = arith.constant 0 : index
    %31 = vector.load %arg9[%c0_20, %c0_21] : memref<8x128xf32, #tpu.memory_space<vmem>>, vector<8x128xf32>
    tpu.vector_store %arg9[%c0_20, %c0_21], %30 {strides = array<i32>} : memref<8x128xf32, #tpu.memory_space<vmem>>, vector<8x128xf32>,
    return
  }
  func.func @transform_0(%arg0: i32) -> (i32, i32) {
    %c0_i32 = arith.constant 0 : i32
    %c0_i32_0 = arith.constant 0 : i32
    return %arg0, %c0_i32 : i32, i32
  }
  func.func @transform_1(%arg0: i32) -> (i32, i32) {
    %c0_i32 = arith.constant 0 : i32
    %c0_i32_0 = arith.constant 0 : i32
    return %arg0, %c0_i32 : i32, i32
  }
  func.func @transform_2(%arg0: i32) -> (i32, i32) {
    %c0_i32 = arith.constant 0 : i32
    %c0_i32_0 = arith.constant 0 : i32
    %c0_i32_1 = arith.constant 0 : i32
    return %c0_i32, %c0_i32_0 : i32, i32
  }
  func.func @transform_3(%arg0: i32) -> (i32, i32) {
    %c0_i32 = arith.constant 0 : i32
    %c0_i32_0 = arith.constant 0 : i32
    %c0_i32_1 = arith.constant 0 : i32
    return %c0_i32, %c0_i32_0 : i32, i32
  }
  func.func @transform_4(%arg0: i32) -> (i32, i32) {
    %c0_i32 = arith.constant 0 : i32
    %c0_i32_0 = arith.constant 0 : i32
    %c0_i32_1 = arith.constant 0 : i32
    return %c0_i32, %c0_i32_0 : i32, i32
  }
  func.func @transform_5(%arg0: i32) -> (i32, i32) {
    %c0_i32 = arith.constant 0 : i32
    %c0_i32_0 = arith.constant 0 : i32
    %c0_i32_1 = arith.constant 0 : i32
    return %c0_i32, %c0_i32_0 : i32, i32
  }
  func.func @transform_6(%arg0: i32) -> (i32, i32) {
    %c0_i32 = arith.constant 0 : i32
    %c0_i32_0 = arith.constant 0 : i32
    %c0_i32_1 = arith.constant 0 : i32
    return %c0_i32, %c0_i32_0 : i32, i32
  }
  func.func @transform_7(%arg0: i32) -> (i32, i32) {
    %c0_i32 = arith.constant 0 : i32
    %c0_i32_0 = arith.constant 0 : i32
    %c0_i32_1 = arith.constant 0 : i32
    return %c0_i32, %c0_i32_0 : i32, i32
  }
  func.func @transform_8(%arg0: i32) -> (i32, i32) {
    %c0_i32 = arith.constant 0 : i32
    %c0_i32_0 = arith.constant 0 : i32
    return %arg0, %c0_i32 : i32, i32
  }
}

module attributes {stable_mosaic.version = 11 : i64} {
  func.func @residual_block_kernel(%arg0: i32, %arg1: memref<8x128xf32, #tpu.memory_space<vmem>>, %arg2: memref<8x16xf32, #tpu.memory_space<vmem>>, %arg3: memref<128x128xbf16, #tpu.memory_space<vmem>>, %arg4: memref<1x128xf32, #tpu.memory_space<vmem>>, %arg5: memref<128x128xbf16, #tpu.memory_space<vmem>>, %arg6: memref<1x128xf32, #tpu.memory_space<vmem>>, %arg7: memref<16x128xbf16, #tpu.memory_space<vmem>>, %arg8: memref<1x128xf32, #tpu.memory_space<vmem>>, %arg9: memref<8x128xf32, #tpu.memory_space<vmem>>) attributes {dimension_semantics = [#tpu.dimension_semantics<parallel>], iteration_bounds = array<i64: 1>, scalar_prefetch = 0 : i64, scratch_operands = 0 : i64, tpu.core_type = #tpu.core_type<tc>, window_params = [{transform_indices = @transform_0, window_bounds = array<i64: 8, 128>}, {transform_indices = @transform_1, window_bounds = array<i64: 8, 16>}, {pipeline_mode = #tpu.pipeline_mode<synchronous>, transform_indices = @transform_2, window_bounds = array<i64: 128, 128>}, {pipeline_mode = #tpu.pipeline_mode<synchronous>, transform_indices = @transform_3, window_bounds = array<i64: 1, 128>}, {pipeline_mode = #tpu.pipeline_mode<synchronous>, transform_indices = @transform_4, window_bounds = array<i64: 128, 128>}, {pipeline_mode = #tpu.pipeline_mode<synchronous>, transform_indices = @transform_5, window_bounds = array<i64: 1, 128>}, {pipeline_mode = #tpu.pipeline_mode<synchronous>, transform_indices = @transform_6, window_bounds = array<i64: 16, 128>}, {pipeline_mode = #tpu.pipeline_mode<synchronous>, transform_indices = @transform_7, window_bounds = array<i64: 1, 128>}, {transform_indices = @transform_8, window_bounds = array<i64: 8, 128>}]} {
    %c0 = arith.constant 0 : index
    %c0_0 = arith.constant 0 : index
    %0 = vector.load %arg1[%c0, %c0_0] : memref<8x128xf32, #tpu.memory_space<vmem>>, vector<8x128xf32>
    %c0_1 = arith.constant 0 : index
    %c0_2 = arith.constant 0 : index
    %1 = vector.load %arg2[%c0_1, %c0_2] : memref<8x16xf32, #tpu.memory_space<vmem>>, vector<8x16xf32>
    %2 = arith.truncf %1 : vector<8x16xf32> to vector<8x16xbf16>
    %c0_3 = arith.constant 0 : index
    %c0_4 = arith.constant 0 : index
    %3 = vector.load %arg7[%c0_3, %c0_4] : memref<16x128xbf16, #tpu.memory_space<vmem>>, vector<16x128xbf16>
    %cst = arith.constant dense<0.000000e+00> : vector<8x128xf32>
    %4 = tpu.matmul %2, %3, %cst {dimension_numbers = #tpu.dot_dimension_numbers<[1], [0], [0], [1], [0, 0, 1, 1], [], []>} : vector<8x16xbf16>, vector<16x128xbf16>, vector<8x128xf32> -> vector<8x128xf32>
    %c0_5 = arith.constant 0 : index
    %c0_6 = arith.constant 0 : index
    %5 = vector.load %arg8[%c0_5, %c0_6] : memref<1x128xf32, #tpu.memory_space<vmem>>, vector<1x128xf32>
    %6 = vector.broadcast %5 : vector<1x128xf32> to vector<8x128xf32>
    %7 = arith.addf %4, %6 : vector<8x128xf32>
    %cst_7 = arith.constant 0.000000e+00 : f32
    %8 = vector.broadcast %cst_7 : f32 to vector<8x128xf32>
    %9 = arith.maximumf %0, %8 : vector<8x128xf32>
    %10 = arith.truncf %9 : vector<8x128xf32> to vector<8x128xbf16>
    %c0_8 = arith.constant 0 : index
    %c0_9 = arith.constant 0 : index
    %11 = vector.load %arg3[%c0_8, %c0_9] : memref<128x128xbf16, #tpu.memory_space<vmem>>, vector<128x128xbf16>
    %cst_10 = arith.constant dense<0.000000e+00> : vector<8x128xf32>
    %12 = tpu.matmul %10, %11, %cst_10 {dimension_numbers = #tpu.dot_dimension_numbers<[1], [0], [0], [1], [0, 0, 1, 1], [], []>} : vector<8x128xbf16>, vector<128x128xbf16>, vector<8x128xf32> -> vector<8x128xf32>
    %c0_11 = arith.constant 0 : index
    %c0_12 = arith.constant 0 : index
    %13 = vector.load %arg4[%c0_11, %c0_12] : memref<1x128xf32, #tpu.memory_space<vmem>>, vector<1x128xf32>
    %14 = vector.broadcast %13 : vector<1x128xf32> to vector<8x128xf32>
    %15 = arith.addf %12, %14 : vector<8x128xf32>
    %cst_13 = arith.constant 0.000000e+00 : f32
    %16 = vector.broadcast %cst_13 : f32 to vector<8x128xf32>
    %17 = arith.maximumf %15, %16 : vector<8x128xf32>
    %18 = arith.truncf %17 : vector<8x128xf32> to vector<8x128xbf16>
    %c0_14 = arith.constant 0 : index
    %c0_15 = arith.constant 0 : index
    %19 = vector.load %arg5[%c0_14, %c0_15] : memref<128x128xbf16, #tpu.memory_space<vmem>>, vector<128x128xbf16>
    %cst_16 = arith.constant dense<0.000000e+00> : vector<8x128xf32>
    %20 = tpu.matmul %18, %19, %cst_16 {dimension_numbers = #tpu.dot_dimension_numbers<[1], [0], [0], [1], [0, 0, 1, 1], [], []>} : vector<8x128xbf16>, vector<128x128xbf16>, vector<8x128xf32> -> vector<8x128xf32>
    %c0_17 = arith.constant 0 : index
    %c0_18 = arith.constant 0 : index
    %21 = vector.load %arg6[%c0_17, %c0_18] : memref<1x128xf32, #tpu.memory_space<vmem>>, vector<1x128xf32>
    %22 = vector.broadcast %21 : vector<1x128xf32> to vector<8x128xf32>
    %23 = arith.addf %20, %22 : vector<8x128xf32>
    %24 = arith.negf %7 : vector<8x128xf32>
    %25 = math.exp %24 : vector<8x128xf32>
    %cst_19 = arith.constant 1.000000e+00 : f32
    %26 = vector.broadcast %cst_19 : f32 to vector<8x128xf32>
    %27 = arith.addf %26, %25 : vector<8x128xf32>
    %28 = arith.divf %26, %27 : vector<8x128xf32>
    %29 = arith.mulf %23, %28 : vector<8x128xf32>
    %30 = arith.addf %0, %29 : vector<8x128xf32>
    %c0_20 = arith.constant 0 : index
    %c0_21 = arith.constant 0 : index
    %31 = vector.load %arg9[%c0_20, %c0_21] : memref<8x128xf32, #tpu.memory_space<vmem>>, vector<8x128xf32>
    tpu.vector_store %arg9[%c0_20, %c0_21], %30 {strides = array<i32>} : memref<8x128xf32, #tpu.memory_space<vmem>>, vector<8x128xf32>,
    return
  }
  func.func @transform_0(%arg0: i32) -> (i32, i32) {
    %c0_i32 = arith.constant 0 : i32
    %c0_i32_0 = arith.constant 0 : i32
    return %arg0, %c0_i32 : i32, i32
  }
  func.func @transform_1(%arg0: i32) -> (i32, i32) {
    %c0_i32 = arith.constant 0 : i32
    %c0_i32_0 = arith.constant 0 : i32
    return %arg0, %c0_i32 : i32, i32
  }
  func.func @transform_2(%arg0: i32) -> (i32, i32) {
    %c0_i32 = arith.constant 0 : i32
    %c0_i32_0 = arith.constant 0 : i32
    %c0_i32_1 = arith.constant 0 : i32
    return %c0_i32, %c0_i32_0 : i32, i32
  }
  func.func @transform_3(%arg0: i32) -> (i32, i32) {
    %c0_i32 = arith.constant 0 : i32
    %c0_i32_0 = arith.constant 0 : i32
    %c0_i32_1 = arith.constant 0 : i32
    return %c0_i32, %c0_i32_0 : i32, i32
  }
  func.func @transform_4(%arg0: i32) -> (i32, i32) {
    %c0_i32 = arith.constant 0 : i32
    %c0_i32_0 = arith.constant 0 : i32
    %c0_i32_1 = arith.constant 0 : i32
    return %c0_i32, %c0_i32_0 : i32, i32
  }
  func.func @transform_5(%arg0: i32) -> (i32, i32) {
    %c0_i32 = arith.constant 0 : i32
    %c0_i32_0 = arith.constant 0 : i32
    %c0_i32_1 = arith.constant 0 : i32
    return %c0_i32, %c0_i32_0 : i32, i32
  }
  func.func @transform_6(%arg0: i32) -> (i32, i32) {
    %c0_i32 = arith.constant 0 : i32
    %c0_i32_0 = arith.constant 0 : i32
    %c0_i32_1 = arith.constant 0 : i32
    return %c0_i32, %c0_i32_0 : i32, i32
  }
  func.func @transform_7(%arg0: i32) -> (i32, i32) {
    %c0_i32 = arith.constant 0 : i32
    %c0_i32_0 = arith.constant 0 : i32
    %c0_i32_1 = arith.constant 0 : i32
    return %c0_i32, %c0_i32_0 : i32, i32
  }
  func.func @transform_8(%arg0: i32) -> (i32, i32) {
    %c0_i32 = arith.constant 0 : i32
    %c0_i32_0 = arith.constant 0 : i32
    return %arg0, %c0_i32 : i32, i32
  }
}

</mosaic_0001>

<llo_original>
// kernel: residual_block.1
$region0: #{residual_block.1}
  #allocation0 [shape = 'u32[]', space=smem, size = 0x4, offset = 0x4, fixed_abs, tag = 'smem constant byte address 0x4 - core index']
  #allocation1 [shape = 'u32[72,128]{1,0:T(1,128)}', space=vmem, size = 0x9000, scoped, tag = 'internal scratch']
  %s0 = inlined_call_operand.vmem [shape: f32[8,128], index: 0, kind: input, shape index: {}]
  %s1 = inlined_call_operand.vmem [shape: f32[8,16], index: 1, kind: input, shape index: {}]
  %s2 = inlined_call_operand.vmem [shape: bf16[128,128], index: 2, kind: input, shape index: {}]
  %s3 = inlined_call_operand.vmem [shape: f32[1,128], index: 3, kind: input, shape index: {}]
  %s4 = inlined_call_operand.vmem [shape: bf16[128,128], index: 4, kind: input, shape index: {}]
  %s5 = inlined_call_operand.vmem [shape: f32[1,128], index: 5, kind: input, shape index: {}]
  %s6 = inlined_call_operand.vmem [shape: bf16[16,128], index: 6, kind: input, shape index: {}]
  %s7 = inlined_call_operand.vmem [shape: f32[1,128], index: 7, kind: input, shape index: {}]
  %s8 = inlined_call_operand.hbm [shape: f32[8,128], index: 8, kind: output, shape index: {}]
  %s9 = sld [smem:[#allocation0]]
  $region42: #{residual_block.1} parent=0
    _
  %s11 = ssub.s32 1, %s9
  %s12 = scalar_select 0, %s11, %s9
  $region1: #{residual_block.1} parent=0
    #allocation2 [shape = 'u8[4096]{0}', space=vmem, size = 0x1000, scoped, tag = 'output window, operand 0, single buffered']
    #allocation3 [shape = 's32[1]{0}', space=sflag, size = 0x4, scoped, tag = 'scoped memory for residual_block.1']
    %13 = vsyncpa [#allocation3], 0
    // Predicated region
    $region2: #{residual_block.1} parent=1 // pred_check
      _
    $region3: #{residual_block.1} parent=1 // pred_check_branch
      %15 = sbr.rel (0) target = $region5
    $region4: #{residual_block.1} parent=1 // pred_region
      _
    $region5: #{residual_block.1} parent=1 // pred_fallthru
      _
    // Predicated region
    $region6: #{residual_block.1} parent=1 // pred_check
      _
    $region7: #{residual_block.1} parent=1 // pred_check_branch
      %17 = sbr.rel (0) target = $region9
    $region8: #{residual_block.1} parent=1 // pred_region
      _
    $region9: #{residual_block.1} parent=1 // pred_fallthru
      _
    // Predicated region
    $region10: #{residual_block.1} parent=1 // pred_check
      _
    $region11: #{residual_block.1} parent=1 // pred_check_branch
      %19 = sbr.rel (0) target = $region13
    $region12: #{residual_block.1} parent=1 // pred_region
      _
    $region13: #{residual_block.1} parent=1 // pred_fallthru
      _
    // Predicated region
    $region14: #{residual_block.1} parent=1 // pred_check
      _
    $region15: #{residual_block.1} parent=1 // pred_check_branch
      %21 = sbr.rel (0) target = $region17
    $region16: #{residual_block.1} parent=1 // pred_region
      _
    $region17: #{residual_block.1} parent=1 // pred_fallthru
      _
    // Predicated region
    $region18: #{residual_block.1} parent=1 // pred_check
      _
    $region19: #{residual_block.1} parent=1 // pred_check_branch
      %23 = sbr.rel (0) target = $region21
    $region20: #{residual_block.1} parent=1 // pred_region
      _
    $region21: #{residual_block.1} parent=1 // pred_fallthru
      _
    // Predicated region
    $region22: #{residual_block.1} parent=1 // pred_check
      _
    $region23: #{residual_block.1} parent=1 // pred_check_branch
      %25 = sbr.rel (0) target = $region25
    $region24: #{residual_block.1} parent=1 // pred_region
      _
    $region25: #{residual_block.1} parent=1 // pred_fallthru
      _
    // Predicated region
    $region26: #{residual_block.1} parent=1 // pred_check
      _
    $region27: #{residual_block.1} parent=1 // pred_check_branch
      %27 = sbr.rel (0) target = $region29
    $region28: #{residual_block.1} parent=1 // pred_region
      _
    $region29: #{residual_block.1} parent=1 // pred_fallthru
      _
    // Predicated region
    $region30: #{residual_block.1} parent=1 // pred_check
      _
    $region31: #{residual_block.1} parent=1 // pred_check_branch
      %29 = sbr.rel (0) target = $region33
    $region32: #{residual_block.1} parent=1 // pred_region
      _
    $region33: #{residual_block.1} parent=1 // pred_fallthru
      _
    %v31 = vld [vmem:[%s0] sm:$0xff]
    %v32 = vld [vmem:[%s1] sm:$0xff]
    %v33 = vpack.c.bf16 %v32, %v32
    %v34 = vld [vmem:[%s6] sm:$0xf]
    %v35 = vld [vmem:[%s6 + $0x4] sm:$0xf]
    %v36 = vld [vmem:[%s7] sm:$0x1]
    %v38 = vperm.slane %v36, 0
    %v42 = vunpack.c.l.b16 %v34
    %v43 = vunpack.c.l.b16 %v35
    %v44 = vpack.c.b16 %v43, %v42
    %vm46 = vcmask 130048
    %v48 = vsel %vm46, %v33, 0
    %50 = vmatpush.bf16.msra.mxu0 0
    %51 = vmatpush.bf16.msra.mxu0 0
    %52 = vmatpush.bf16.msra.mxu0 0
    %53 = vmatpush.bf16.msra.mxu0 0
    %54 = vmatpush.bf16.msra.mxu0 0
    %55 = vmatpush.bf16.msra.mxu0 0
    %56 = vmatpush.bf16.msra.mxu0 0
    %57 = vmatpush.bf16.msra.mxu0 %v44
    %58 = vmatmul.bf16.gmra.mxu0 %v48
    %v59 = vpop.f32.mrf.mxu0
    %v60 = vadd.f32 %v38, %v59
    %v61 = vpop.f32.mrf.mxu0
    %62 = vdwg.mxu0
    %v63 = vmax.f32 %v31, 0.0
    %v64 = vpack.c.bf16 %v63, %v63
    %v65 = vld [vmem:[%s2] sm:$0xf]
    %v66 = vld [vmem:[%s2 + $0x4] sm:$0xf]
    %v67 = vld [vmem:[%s2 + $0x8] sm:$0xf]
    %v68 = vld [vmem:[%s2 + $0xc] sm:$0xf]
    %v69 = vld [vmem:[%s2 + $0x10] sm:$0xf]
    %v70 = vld [vmem:[%s2 + $0x14] sm:$0xf]
    %v71 = vld [vmem:[%s2 + $0x18] sm:$0xf]
    %v72 = vld [vmem:[%s2 + $0x1c] sm:$0xf]
    %v73 = vld [vmem:[%s2 + $0x20] sm:$0xf]
    %v74 = vld [vmem:[%s2 + $0x24] sm:$0xf]
    %v75 = vld [vmem:[%s2 + $0x28] sm:$0xf]
    %v76 = vld [vmem:[%s2 + $0x2c] sm:$0xf]
    %v77 = vld [vmem:[%s2 + $0x30] sm:$0xf]
    %v78 = vld [vmem:[%s2 + $0x34] sm:$0xf]
    %v79 = vld [vmem:[%s2 + $0x38] sm:$0xf]
    %v80 = vld [vmem:[%s2 + $0x3c] sm:$0xf]
    %v81 = vld [vmem:[%s3] sm:$0x1]
    %v83 = vperm.slane %v81, 0
    %v101 = vunpack.c.l.b16 %v65
    %v102 = vunpack.c.l.b16 %v66
    %v103 = vunpack.c.l.b16 %v67
    %v104 = vunpack.c.l.b16 %v68
    %v105 = vunpack.c.l.b16 %v69
    %v106 = vunpack.c.l.b16 %v70
    %v107 = vunpack.c.l.b16 %v71
    %v108 = vunpack.c.l.b16 %v72
    %v109 = vunpack.c.l.b16 %v73
    %v110 = vunpack.c.l.b16 %v74
    %v111 = vunpack.c.l.b16 %v75
    %v112 = vunpack.c.l.b16 %v76
    %v113 = vunpack.c.l.b16 %v77
    %v114 = vunpack.c.l.b16 %v78
    %v115 = vunpack.c.l.b16 %v79
    %v116 = vunpack.c.l.b16 %v80
    %v117 = vpack.c.b16 %v102, %v101
    %v118 = vpack.c.b16 %v104, %v103
    %v119 = vpack.c.b16 %v106, %v105
    %v120 = vpack.c.b16 %v108, %v107
    %v121 = vpack.c.b16 %v110, %v109
    %v122 = vpack.c.b16 %v112, %v111
    %v123 = vpack.c.b16 %v114, %v113
    %v124 = vpack.c.b16 %v116, %v115
    %133 = vmatpush.bf16.msra.mxu0 %v124
    %134 = vmatpush.bf16.msra.mxu0 %v123
    %135 = vmatpush.bf16.msra.mxu0 %v122
    %136 = vmatpush.bf16.msra.mxu0 %v121
    %137 = vmatpush.bf16.msra.mxu0 %v120
    %138 = vmatpush.bf16.msra.mxu0 %v119
    %139 = vmatpush.bf16.msra.mxu0 %v118
    %140 = vmatpush.bf16.msra.mxu0 %v117
    %141 = vmatmul.bf16.gmra.mxu0 %v64
    %v142 = vpop.f32.mrf.mxu0
    %v143 = vadd.f32 %v83, %v142
    %v144 = vpop.f32.mrf.mxu0
    %145 = vdwg.mxu0
    %v146 = vmax.f32 %v143, 0.0
    %v147 = vpack.c.bf16 %v146, %v146
    %v148 = vld [vmem:[%s4] sm:$0xf]
    %v149 = vld [vmem:[%s4 + $0x4] sm:$0xf]
    %v150 = vld [vmem:[%s4 + $0x8] sm:$0xf]
    %v151 = vld [vmem:[%s4 + $0xc] sm:$0xf]
    %v152 = vld [vmem:[%s4 + $0x10] sm:$0xf]
    %v153 = vld [vmem:[%s4 + $0x14] sm:$0xf]
    %v154 = vld [vmem:[%s4 + $0x18] sm:$0xf]
    %v155 = vld [vmem:[%s4 + $0x1c] sm:$0xf]
    %v156 = vld [vmem:[%s4 + $0x20] sm:$0xf]
    %v157 = vld [vmem:[%s4 + $0x24] sm:$0xf]
    %v158 = vld [vmem:[%s4 + $0x28] sm:$0xf]
    %v159 = vld [vmem:[%s4 + $0x2c] sm:$0xf]
    %v160 = vld [vmem:[%s4 + $0x30] sm:$0xf]
    %v161 = vld [vmem:[%s4 + $0x34] sm:$0xf]
    %v162 = vld [vmem:[%s4 + $0x38] sm:$0xf]
    %v163 = vld [vmem:[%s4 + $0x3c] sm:$0xf]
    %v164 = vld [vmem:[%s5] sm:$0x1]
    %v166 = vperm.slane %v164, 0
    %v184 = vunpack.c.l.b16 %v148
    %v185 = vunpack.c.l.b16 %v149
    %v186 = vunpack.c.l.b16 %v150
    %v187 = vunpack.c.l.b16 %v151
    %v188 = vunpack.c.l.b16 %v152
    %v189 = vunpack.c.l.b16 %v153
    %v190 = vunpack.c.l.b16 %v154
    %v191 = vunpack.c.l.b16 %v155
    %v192 = vunpack.c.l.b16 %v156
    %v193 = vunpack.c.l.b16 %v157
    %v194 = vunpack.c.l.b16 %v158
    %v195 = vunpack.c.l.b16 %v159
    %v196 = vunpack.c.l.b16 %v160
    %v197 = vunpack.c.l.b16 %v161
    %v198 = vunpack.c.l.b16 %v162
    %v199 = vunpack.c.l.b16 %v163
    %v200 = vpack.c.b16 %v185, %v184
    %v201 = vpack.c.b16 %v187, %v186
    %v202 = vpack.c.b16 %v189, %v188
    %v203 = vpack.c.b16 %v191, %v190
    %v204 = vpack.c.b16 %v193, %v192
    %v205 = vpack.c.b16 %v195, %v194
    %v206 = vpack.c.b16 %v197, %v196
    %v207 = vpack.c.b16 %v199, %v198
    %216 = vmatpush.bf16.msra.mxu0 %v207
    %217 = vmatpush.bf16.msra.mxu0 %v206
    %218 = vmatpush.bf16.msra.mxu0 %v205
    %219 = vmatpush.bf16.msra.mxu0 %v204
    %220 = vmatpush.bf16.msra.mxu0 %v203
    %221 = vmatpush.bf16.msra.mxu0 %v202
    %222 = vmatpush.bf16.msra.mxu0 %v201
    %223 = vmatpush.bf16.msra.mxu0 %v200
    %224 = vmatmul.bf16.gmra.mxu0 %v147
    %v225 = vpop.f32.mrf.mxu0
    %v226 = vadd.f32 %v166, %v225
    %v227 = vpop.f32.mrf.mxu0
    %228 = vdwg.mxu0
    %v229 = vxor.u32 %v60, 2147483648
    %v230 = vmul.f32 %v229, 1.442695
    %v231 = vpow.pop %v230
    %v232 = vadd.f32 %v231, 1.0
    %v233 = vrcp.pop %v232
    %v234 = vmul.f32 %v232, %v233
    %v235 = vsub.f32 1.0, %v234
    %v236 = vmul.f32 %v233, %v235
    %v237 = vadd.f32 %v233, %v236
    %vm238 = vweird.f32 %v232
    %vm239 = vweird.f32 %v233
    %vm240 = vmor %vm238, %vm239
    %v241 = vsel %vm240, %v233, %v237
    %v242 = vand.u32 2147483647, %v232
    %vm243 = vcmp.eq.f32.partialorder %v242, 8.507059e+37
    %v244 = vand.u32 %v232, 2147483648
    %v245 = vor.u32 1.1754944e-38, %v244
    %v246 = vsel %vm243, %v245, %v241
    %v247 = vmul.f32 1.0, %v246
    %v248 = vmul.f32 %v226, %v247
    %v249 = vadd.f32 %v31, %v248
    %250 = vst [vmem:[#allocation2] sm:$0xff] %v249
    // Predicated region
    $region34: #{residual_block.1} parent=1 // pred_check
      _
    $region35: #{residual_block.1} parent=1 // pred_check_branch
      %252 = sbr.rel (0) target = $region37
    $region36: #{residual_block.1} parent=1 // pred_region
      %254 = vsyncadd [#allocation3], 0
      %s256 = sshll.u32 [#allocation2], 4
      %s257 = int_to_ptr.vmem [resolvable:$true] %s256
      %s258 = sshll.u32 %s8, 4
      %s259 = int_to_ptr.hbm [resolvable:$true] %s258
      %261 = dma.vmem_to_hbm [thread:$0]  %s257, 128, %s259, [#allocation3]
    $region37: #{residual_block.1} parent=1 // pred_fallthru
      _
    // Predicated region
    $region38: #{residual_block.1} parent=1 // pred_check
      _
    $region39: #{residual_block.1} parent=1 // pred_check_branch
      %263 = sbr.rel (0) target = $region41
    $region40: #{residual_block.1} parent=1 // pred_region
      %265 = dma.done [#allocation3], 128
    $region41: #{residual_block.1} parent=1 // pred_fallthru
      _
    %266 = vsyncpa [#allocation3], 1

// kernel: residual_block.1
$region0: #{residual_block.1}
  #allocation0 [shape = 'u32[]', space=smem, size = 0x4, offset = 0x4, fixed_abs, tag = 'smem constant byte address 0x4 - core index']
  #allocation1 [shape = 'u32[72,128]{1,0:T(1,128)}', space=vmem, size = 0x9000, scoped, tag = 'internal scratch']
  %s0 = inlined_call_operand.vmem [shape: f32[8,128], index: 0, kind: input, shape index: {}]
  %s1 = inlined_call_operand.vmem [shape: f32[8,16], index: 1, kind: input, shape index: {}]
  %s2 = inlined_call_operand.vmem [shape: bf16[128,128], index: 2, kind: input, shape index: {}]
  %s3 = inlined_call_operand.vmem [shape: f32[1,128], index: 3, kind: input, shape index: {}]
  %s4 = inlined_call_operand.vmem [shape: bf16[128,128], index: 4, kind: input, shape index: {}]
  %s5 = inlined_call_operand.vmem [shape: f32[1,128], index: 5, kind: input, shape index: {}]
  %s6 = inlined_call_operand.vmem [shape: bf16[16,128], index: 6, kind: input, shape index: {}]
  %s7 = inlined_call_operand.vmem [shape: f32[1,128], index: 7, kind: input, shape index: {}]
  %s8 = inlined_call_operand.hbm [shape: f32[8,128], index: 8, kind: output, shape index: {}]
  %s9 = sld [smem:[#allocation0]]
  $region42: #{residual_block.1} parent=0
    _
  %s11 = ssub.s32 1, %s9
  %s12 = scalar_select 0, %s11, %s9
  $region1: #{residual_block.1} parent=0
    #allocation2 [shape = 'u8[4096]{0}', space=vmem, size = 0x1000, scoped, tag = 'output window, operand 0, single buffered']
    #allocation3 [shape = 's32[1]{0}', space=sflag, size = 0x4, scoped, tag = 'scoped memory for residual_block.1']
    %13 = vsyncpa [#allocation3], 0
    // Predicated region
    $region2: #{residual_block.1} parent=1 // pred_check
      _
    $region3: #{residual_block.1} parent=1 // pred_check_branch
      %15 = sbr.rel (0) target = $region5
    $region4: #{residual_block.1} parent=1 // pred_region
      _
    $region5: #{residual_block.1} parent=1 // pred_fallthru
      _
    // Predicated region
    $region6: #{residual_block.1} parent=1 // pred_check
      _
    $region7: #{residual_block.1} parent=1 // pred_check_branch
      %17 = sbr.rel (0) target = $region9
    $region8: #{residual_block.1} parent=1 // pred_region
      _
    $region9: #{residual_block.1} parent=1 // pred_fallthru
      _
    // Predicated region
    $region10: #{residual_block.1} parent=1 // pred_check
      _
    $region11: #{residual_block.1} parent=1 // pred_check_branch
      %19 = sbr.rel (0) target = $region13
    $region12: #{residual_block.1} parent=1 // pred_region
      _
    $region13: #{residual_block.1} parent=1 // pred_fallthru
      _
    // Predicated region
    $region14: #{residual_block.1} parent=1 // pred_check
      _
    $region15: #{residual_block.1} parent=1 // pred_check_branch
      %21 = sbr.rel (0) target = $region17
    $region16: #{residual_block.1} parent=1 // pred_region
      _
    $region17: #{residual_block.1} parent=1 // pred_fallthru
      _
    // Predicated region
    $region18: #{residual_block.1} parent=1 // pred_check
      _
    $region19: #{residual_block.1} parent=1 // pred_check_branch
      %23 = sbr.rel (0) target = $region21
    $region20: #{residual_block.1} parent=1 // pred_region
      _
    $region21: #{residual_block.1} parent=1 // pred_fallthru
      _
    // Predicated region
    $region22: #{residual_block.1} parent=1 // pred_check
      _
    $region23: #{residual_block.1} parent=1 // pred_check_branch
      %25 = sbr.rel (0) target = $region25
    $region24: #{residual_block.1} parent=1 // pred_region
      _
    $region25: #{residual_block.1} parent=1 // pred_fallthru
      _
    // Predicated region
    $region26: #{residual_block.1} parent=1 // pred_check
      _
    $region27: #{residual_block.1} parent=1 // pred_check_branch
      %27 = sbr.rel (0) target = $region29
    $region28: #{residual_block.1} parent=1 // pred_region
      _
    $region29: #{residual_block.1} parent=1 // pred_fallthru
      _
    // Predicated region
    $region30: #{residual_block.1} parent=1 // pred_check
      _
    $region31: #{residual_block.1} parent=1 // pred_check_branch
      %29 = sbr.rel (0) target = $region33
    $region32: #{residual_block.1} parent=1 // pred_region
      _
    $region33: #{residual_block.1} parent=1 // pred_fallthru
      _
    %v31 = vld [vmem:[%s0] sm:$0xff]
    %v32 = vld [vmem:[%s1] sm:$0xff]
    %v33 = vpack.c.bf16 %v32, %v32
    %v34 = vld [vmem:[%s6] sm:$0xf]
    %v35 = vld [vmem:[%s6 + $0x4] sm:$0xf]
    %v36 = vld [vmem:[%s7] sm:$0x1]
    %v38 = vperm.slane %v36, 0
    %v42 = vunpack.c.l.b16 %v34
    %v43 = vunpack.c.l.b16 %v35
    %v44 = vpack.c.b16 %v43, %v42
    %vm46 = vcmask 130048
    %v48 = vsel %vm46, %v33, 0
    %50 = vmatpush.bf16.msra.mxu0 0
    %51 = vmatpush.bf16.msra.mxu0 0
    %52 = vmatpush.bf16.msra.mxu0 0
    %53 = vmatpush.bf16.msra.mxu0 0
    %54 = vmatpush.bf16.msra.mxu0 0
    %55 = vmatpush.bf16.msra.mxu0 0
    %56 = vmatpush.bf16.msra.mxu0 0
    %57 = vmatpush.bf16.msra.mxu0 %v44
    %58 = vmatmul.bf16.gmra.mxu0 %v48
    %v59 = vpop.f32.mrf.mxu0
    %v60 = vadd.f32 %v38, %v59
    %v61 = vpop.f32.mrf.mxu0
    %62 = vdwg.mxu0
    %v63 = vmax.f32 %v31, 0.0
    %v64 = vpack.c.bf16 %v63, %v63
    %v65 = vld [vmem:[%s2] sm:$0xf]
    %v66 = vld [vmem:[%s2 + $0x4] sm:$0xf]
    %v67 = vld [vmem:[%s2 + $0x8] sm:$0xf]
    %v68 = vld [vmem:[%s2 + $0xc] sm:$0xf]
    %v69 = vld [vmem:[%s2 + $0x10] sm:$0xf]
    %v70 = vld [vmem:[%s2 + $0x14] sm:$0xf]
    %v71 = vld [vmem:[%s2 + $0x18] sm:$0xf]
    %v72 = vld [vmem:[%s2 + $0x1c] sm:$0xf]
    %v73 = vld [vmem:[%s2 + $0x20] sm:$0xf]
    %v74 = vld [vmem:[%s2 + $0x24] sm:$0xf]
    %v75 = vld [vmem:[%s2 + $0x28] sm:$0xf]
    %v76 = vld [vmem:[%s2 + $0x2c] sm:$0xf]
    %v77 = vld [vmem:[%s2 + $0x30] sm:$0xf]
    %v78 = vld [vmem:[%s2 + $0x34] sm:$0xf]
    %v79 = vld [vmem:[%s2 + $0x38] sm:$0xf]
    %v80 = vld [vmem:[%s2 + $0x3c] sm:$0xf]
    %v81 = vld [vmem:[%s3] sm:$0x1]
    %v83 = vperm.slane %v81, 0
    %v101 = vunpack.c.l.b16 %v65
    %v102 = vunpack.c.l.b16 %v66
    %v103 = vunpack.c.l.b16 %v67
    %v104 = vunpack.c.l.b16 %v68
    %v105 = vunpack.c.l.b16 %v69
    %v106 = vunpack.c.l.b16 %v70
    %v107 = vunpack.c.l.b16 %v71
    %v108 = vunpack.c.l.b16 %v72
    %v109 = vunpack.c.l.b16 %v73
    %v110 = vunpack.c.l.b16 %v74
    %v111 = vunpack.c.l.b16 %v75
    %v112 = vunpack.c.l.b16 %v76
    %v113 = vunpack.c.l.b16 %v77
    %v114 = vunpack.c.l.b16 %v78
    %v115 = vunpack.c.l.b16 %v79
    %v116 = vunpack.c.l.b16 %v80
    %v117 = vpack.c.b16 %v102, %v101
    %v118 = vpack.c.b16 %v104, %v103
    %v119 = vpack.c.b16 %v106, %v105
    %v120 = vpack.c.b16 %v108, %v107
    %v121 = vpack.c.b16 %v110, %v109
    %v122 = vpack.c.b16 %v112, %v111
    %v123 = vpack.c.b16 %v114, %v113
    %v124 = vpack.c.b16 %v116, %v115
    %133 = vmatpush.bf16.msra.mxu0 %v124
    %134 = vmatpush.bf16.msra.mxu0 %v123
    %135 = vmatpush.bf16.msra.mxu0 %v122
    %136 = vmatpush.bf16.msra.mxu0 %v121
    %137 = vmatpush.bf16.msra.mxu0 %v120
    %138 = vmatpush.bf16.msra.mxu0 %v119
    %139 = vmatpush.bf16.msra.mxu0 %v118
    %140 = vmatpush.bf16.msra.mxu0 %v117
    %141 = vmatmul.bf16.gmra.mxu0 %v64
    %v142 = vpop.f32.mrf.mxu0
    %v143 = vadd.f32 %v83, %v142
    %v144 = vpop.f32.mrf.mxu0
    %145 = vdwg.mxu0
    %v146 = vmax.f32 %v143, 0.0
    %v147 = vpack.c.bf16 %v146, %v146
    %v148 = vld [vmem:[%s4] sm:$0xf]
    %v149 = vld [vmem:[%s4 + $0x4] sm:$0xf]
    %v150 = vld [vmem:[%s4 + $0x8] sm:$0xf]
    %v151 = vld [vmem:[%s4 + $0xc] sm:$0xf]
    %v152 = vld [vmem:[%s4 + $0x10] sm:$0xf]
    %v153 = vld [vmem:[%s4 + $0x14] sm:$0xf]
    %v154 = vld [vmem:[%s4 + $0x18] sm:$0xf]
    %v155 = vld [vmem:[%s4 + $0x1c] sm:$0xf]
    %v156 = vld [vmem:[%s4 + $0x20] sm:$0xf]
    %v157 = vld [vmem:[%s4 + $0x24] sm:$0xf]
    %v158 = vld [vmem:[%s4 + $0x28] sm:$0xf]
    %v159 = vld [vmem:[%s4 + $0x2c] sm:$0xf]
    %v160 = vld [vmem:[%s4 + $0x30] sm:$0xf]
    %v161 = vld [vmem:[%s4 + $0x34] sm:$0xf]
    %v162 = vld [vmem:[%s4 + $0x38] sm:$0xf]
    %v163 = vld [vmem:[%s4 + $0x3c] sm:$0xf]
    %v164 = vld [vmem:[%s5] sm:$0x1]
    %v166 = vperm.slane %v164, 0
    %v184 = vunpack.c.l.b16 %v148
    %v185 = vunpack.c.l.b16 %v149
    %v186 = vunpack.c.l.b16 %v150
    %v187 = vunpack.c.l.b16 %v151
    %v188 = vunpack.c.l.b16 %v152
    %v189 = vunpack.c.l.b16 %v153
    %v190 = vunpack.c.l.b16 %v154
    %v191 = vunpack.c.l.b16 %v155
    %v192 = vunpack.c.l.b16 %v156
    %v193 = vunpack.c.l.b16 %v157
    %v194 = vunpack.c.l.b16 %v158
    %v195 = vunpack.c.l.b16 %v159
    %v196 = vunpack.c.l.b16 %v160
    %v197 = vunpack.c.l.b16 %v161
    %v198 = vunpack.c.l.b16 %v162
    %v199 = vunpack.c.l.b16 %v163
    %v200 = vpack.c.b16 %v185, %v184
    %v201 = vpack.c.b16 %v187, %v186
    %v202 = vpack.c.b16 %v189, %v188
    %v203 = vpack.c.b16 %v191, %v190
    %v204 = vpack.c.b16 %v193, %v192
    %v205 = vpack.c.b16 %v195, %v194
    %v206 = vpack.c.b16 %v197, %v196
    %v207 = vpack.c.b16 %v199, %v198
    %216 = vmatpush.bf16.msra.mxu0 %v207
    %217 = vmatpush.bf16.msra.mxu0 %v206
    %218 = vmatpush.bf16.msra.mxu0 %v205
    %219 = vmatpush.bf16.msra.mxu0 %v204
    %220 = vmatpush.bf16.msra.mxu0 %v203
    %221 = vmatpush.bf16.msra.mxu0 %v202
    %222 = vmatpush.bf16.msra.mxu0 %v201
    %223 = vmatpush.bf16.msra.mxu0 %v200
    %224 = vmatmul.bf16.gmra.mxu0 %v147
    %v225 = vpop.f32.mrf.mxu0
    %v226 = vadd.f32 %v166, %v225
    %v227 = vpop.f32.mrf.mxu0
    %228 = vdwg.mxu0
    %v229 = vxor.u32 %v60, 2147483648
    %v230 = vmul.f32 %v229, 1.442695
    %v231 = vpow.pop %v230
    %v232 = vadd.f32 %v231, 1.0
    %v233 = vrcp.pop %v232
    %v234 = vmul.f32 %v232, %v233
    %v235 = vsub.f32 1.0, %v234
    %v236 = vmul.f32 %v233, %v235
    %v237 = vadd.f32 %v233, %v236
    %vm238 = vweird.f32 %v232
    %vm239 = vweird.f32 %v233
    %vm240 = vmor %vm238, %vm239
    %v241 = vsel %vm240, %v233, %v237
    %v242 = vand.u32 2147483647, %v232
    %vm243 = vcmp.eq.f32.partialorder %v242, 8.507059e+37
    %v244 = vand.u32 %v232, 2147483648
    %v245 = vor.u32 1.1754944e-38, %v244
    %v246 = vsel %vm243, %v245, %v241
    %v247 = vmul.f32 1.0, %v246
    %v248 = vmul.f32 %v226, %v247
    %v249 = vadd.f32 %v31, %v248
    %250 = vst [vmem:[#allocation2] sm:$0xff] %v249
    // Predicated region
    $region34: #{residual_block.1} parent=1 // pred_check
      _
    $region35: #{residual_block.1} parent=1 // pred_check_branch
      %252 = sbr.rel (0) target = $region37
    $region36: #{residual_block.1} parent=1 // pred_region
      %254 = vsyncadd [#allocation3], 0
      %s256 = sshll.u32 [#allocation2], 4
      %s257 = int_to_ptr.vmem [resolvable:$true] %s256
      %s258 = sshll.u32 %s8, 4
      %s259 = int_to_ptr.hbm [resolvable:$true] %s258
      %261 = dma.vmem_to_hbm [thread:$0]  %s257, 128, %s259, [#allocation3]
    $region37: #{residual_block.1} parent=1 // pred_fallthru
      _
    // Predicated region
    $region38: #{residual_block.1} parent=1 // pred_check
      _
    $region39: #{residual_block.1} parent=1 // pred_check_branch
      %263 = sbr.rel (0) target = $region41
    $region40: #{residual_block.1} parent=1 // pred_region
      %265 = dma.done [#allocation3], 128
    $region41: #{residual_block.1} parent=1 // pred_fallthru
      _
    %266 = vsyncpa [#allocation3], 1

</llo_original>
